<compile_context>
chip_gen: v7x
topology: tpu7x:2x2x1
jax: 0.10.0
libtpu: 0.0.40
codegen_flags: <defaults>
</compile_context>

<pallas_src>
import jax
import jax.numpy as jnp
from jax.experimental import pallas as pl
from jax.experimental.pallas import tpu as pltpu


def _round_up(a: int, m: int) -> int:
    return (a + m - 1) // m * m


def _cdiv(a: int, b: int) -> int:
    return (a + b - 1) // b


def _vmem_capacity_bytes() -> int:
    """Physical VMEM per TensorCore; safe fallback if the query is unavailable."""
    try:
        info = pltpu.get_tpu_info()
        cap = getattr(info, "vmem_capacity_bytes", None)
        if cap:
            return int(cap)
    except Exception:
        pass
    return 64 << 20  # lower bound across v5e / v6e / v7x


def residual_block_kernel(x_ref, w_ref, b_ref, o_ref, act_ref):
    # x_ref:   [tm, Dp]     input row tile (resident across the layer axis)
    # w_ref:   [1, Dp, Dp]  current layer's weight, (in, out) layout
    # b_ref:   [L, 1, Dp]   VMEM-resident bias stack (constant index_map)
    # o_ref:   [tm, Dp]     output tile (written only at the last layer)
    # act_ref: [tm, Dp]     f32 VMEM scratch: running activation
    l = pl.program_id(1)

    @pl.when(l == 0)
    def _init():
        act_ref[...] = x_ref[...].astype(jnp.float32)

    w = w_ref[0]                                   # [Dp, Dp], static slice
    act = act_ref[...].astype(w.dtype)             # MXU operand dtype = weight dtype
    y = jnp.dot(act, w, preferred_element_type=jnp.float32)
    act_ref[...] = y + b_ref[l].astype(jnp.float32)   # [1, Dp] broadcasts over rows

    @pl.when(l == pl.num_programs(1) - 1)
    def _finalize():
        o_ref[...] = (act_ref[...] + x_ref[...].astype(jnp.float32)).astype(o_ref.dtype)


def prepare_params(weights, biases):
    """Pad [L, D, D] (in,out) weights / [L, D] biases to Dp = round_up(D, 128).

    Call ONCE at init time (not per forward) so no per-call padded copy of the
    whole parameter stack is materialized in HBM.
    """
    L, D, _ = weights.shape
    Dp = _round_up(D, 128)
    if Dp != D:
        weights = jnp.pad(weights, ((0, 0), (0, Dp - D), (0, Dp - D)))
        biases = jnp.pad(biases, ((0, 0), (0, Dp - D)))
    return weights, biases.reshape(L, 1, Dp)


def residual_block(x, weights_p, biases_p, *, tm_target=1024):
    """x: [B, S, D]; weights_p: [L, Dp, Dp] (in,out, pre-padded); biases_p: [L, 1, Dp]."""
    B, S, D = x.shape
    L, Dp, _ = weights_p.shape
    assert biases_p.shape == (L, 1, Dp), "biases must be pre-padded via prepare_params"
    assert Dp >= D and Dp % 128 == 0
    M = B * S

    x_bytes = x.dtype.itemsize
    w_bytes = weights_p.dtype.itemsize
    b_bytes = biases_p.dtype.itemsize

    # ---- Size the row tile against the chip's VMEM budget ----------------
    vmem_cap = _vmem_capacity_bytes()
    budget = vmem_cap - (8 << 20)                       # headroom for compiler internals
    fixed_bytes = 2 * Dp * Dp * w_bytes + _round_up(L, 8) * Dp * b_bytes
    per_row_bytes = Dp * (2 * x_bytes + 2 * x_bytes + 4)  # x dbuf + out dbuf + f32 act
    if fixed_bytes + 8 * per_row_bytes > budget:
        # TODO(synk): N-tile the weight panel for very large D instead of raising.
        raise ValueError(
            f"double-buffered [{Dp},{Dp}] weight panel does not fit VMEM "
            f"({fixed_bytes} B fixed vs {budget} B budget)")
    tm_fit = max(8, (budget - fixed_bytes) // per_row_bytes)

    tm = max(8, (min(tm_target, tm_fit) // 8) * 8)
    n_tiles = _cdiv(M, tm)
    # Megacore (v7x): prefer >= 2 row tiles when there are enough rows to split.
    if n_tiles == 1 and M >= 256:
        n_tiles = 2
    # Shrink tm so the last tile is nearly full (no wasted MXU work / weight streaming).
    tm = _round_up(_cdiv(M, n_tiles), 8)
    Mp = n_tiles * tm

    # ---- Pad activations (cheap, per-call) --------------------------------
    x_flat = x.reshape(M, D)
    if Mp != M or Dp != D:
        x_flat = jnp.pad(x_flat, ((0, Mp - M), (0, Dp - D)))

    # ---- VMEM limit & cost estimate ---------------------------------------
    vmem_est = (2 * tm * Dp * x_bytes          # x tile, double-buffered
                + 2 * Dp * Dp * w_bytes        # weight panel, double-buffered
                + _round_up(L, 8) * Dp * b_bytes   # resident bias stack
                + 2 * tm * Dp * x_bytes        # out tile, double-buffered
                + tm * Dp * 4)                 # f32 activation scratch
    vmem_limit = int(min(vmem_cap - (2 << 20),
                         max(32 << 20, int(vmem_est * 1.3) + (2 << 20))))

    cost = pl.CostEstimate(
        flops=2 * Mp * Dp * Dp * L,
        transcendentals=0,
        bytes_accessed=(n_tiles * L * Dp * Dp * w_bytes   # weights re-read per row tile
                        + Mp * Dp * x_bytes               # input rows read
                        + Mp * Dp * x_bytes               # output rows written
                        + L * Dp * b_bytes),              # biases read once
    )

    out_flat = pl.pallas_call(
        residual_block_kernel,
        out_shape=jax.ShapeDtypeStruct((Mp, Dp), x.dtype),
        grid_spec=pltpu.PrefetchScalarGridSpec(
            num_scalar_prefetch=0,
            grid=(n_tiles, L),
            in_specs=[
                pl.BlockSpec((tm, Dp), lambda i, l: (i, 0)),       # x rows (resident over l)
                pl.BlockSpec((1, Dp, Dp), lambda i, l: (l, 0, 0)),  # layer-l weight panel
                pl.BlockSpec((L, 1, Dp), lambda i, l: (0, 0, 0)),   # whole bias stack, resident
            ],
            out_specs=pl.BlockSpec((tm, Dp), lambda i, l: (i, 0)),
            scratch_shapes=[pltpu.VMEM((tm, Dp), jnp.float32)],
        ),
        compiler_params=pltpu.CompilerParams(
            dimension_semantics=("parallel", "arbitrary"),
            vmem_limit_bytes=vmem_limit,
        ),
        cost_estimate=cost,
    )(x_flat, weights_p, biases_p)

    return out_flat[:M, :D].reshape(B, S, D)


def init_params(key, embed_dim, length, dtype=jnp.float32):
    """Deterministic init mimicking nn.Linear's U(-1/sqrt(D), 1/sqrt(D))."""
    bound = 1.0 / jnp.sqrt(embed_dim)
    ws, bs = [], []
    for _ in range(length):
        kw, kb, key = jax.random.split(key, 3)
        # PyTorch stores (out, in); keep (in, out) so the kernel does x @ W.
        w_pt = jax.random.uniform(kw, (embed_dim, embed_dim),
                                  minval=-bound, maxval=bound, dtype=jnp.float32)
        b = jax.random.uniform(kb, (embed_dim,),
                               minval=-bound, maxval=bound, dtype=jnp.float32)
        ws.append(w_pt.T)
        bs.append(b)
    return jnp.stack(ws, 0).astype(dtype), jnp.stack(bs, 0).astype(dtype)


def reference(x, weights, biases):
    """Pure-JAX reference matching the PyTorch forward."""
    B, S, D = x.shape
    cache = x.reshape(-1, D).astype(jnp.float32)
    for l in range(weights.shape[0]):
        cache = cache @ weights[l].astype(jnp.float32) + biases[l].astype(jnp.float32)
    return ((cache + x.reshape(-1, D)).reshape(B, S, D)).astype(x.dtype)


if __name__ == "__main__":
    embed_dim = 32
    length = 3
    B, S = 2, 8

    key = jax.random.PRNGKey(0)
    kx, kp = jax.random.split(key)
    x = jax.random.normal(kx, (B, S, embed_dim), dtype=jnp.float32)
    # f32 params for an exact correctness check; pass bf16 x / params for peak
    # MXU throughput on v5e/v6e/v7x (the kernel casts activations to weight dtype).
    weights, biases = init_params(kp, embed_dim, length, dtype=jnp.float32)
    # Pad / layout params ONCE (hoisted out of the per-call path).
    weights_p, biases_p = prepare_params(weights, biases)

    out = residual_block(x, weights_p, biases_p)
    jax.block_until_ready(out)

    ref = reference(x, weights, biases)
    assert out.shape == ref.shape
    assert jnp.allclose(out, ref, atol=2e-5, rtol=1e-5), "mismatch vs reference"
    print("KERNEL_OK")
</pallas_src>

<mosaic_0001>
module attributes {stable_mosaic.version = 11 : i64} {
  func.func @residual_block_kernel(%arg0: i32, %arg1: i32, %arg2: memref<16x128xf32, #tpu.memory_space<vmem>>, %arg3: memref<1x128x128xf32, #tpu.memory_space<vmem>>, %arg4: memref<3x1x128xf32, #tpu.memory_space<vmem>>, %arg5: memref<16x128xf32, #tpu.memory_space<vmem>>, %arg6: memref<16x128xf32, #tpu.memory_space<vmem>>) attributes {dimension_semantics = [#tpu.dimension_semantics<parallel>, #tpu.dimension_semantics<arbitrary>], iteration_bounds = array<i64: 1, 3>, scalar_prefetch = 0 : i64, scratch_operands = 1 : i64, tpu.core_type = #tpu.core_type<tc>, window_params = [{transform_indices = @transform_0, window_bounds = array<i64: 16, 128>}, {transform_indices = @transform_1, window_bounds = array<i64: 1, 128, 128>}, {pipeline_mode = #tpu.pipeline_mode<synchronous>, transform_indices = @transform_2, window_bounds = array<i64: 3, 1, 128>}, {transform_indices = @transform_3, window_bounds = array<i64: 16, 128>}]} {
    %c0_i32 = arith.constant 0 : i32
    %0 = arith.cmpi eq, %arg1, %c0_i32 : i32
    %1 = arith.extui %0 : i1 to i32
    %c0_i32_0 = arith.constant 0 : i32
    %2 = arith.cmpi ne, %1, %c0_i32_0 : i32
    scf.if %2 {
      %c0_10 = arith.constant 0 : index
      %c0_11 = arith.constant 0 : index
      %16 = vector.load %arg2[%c0_10, %c0_11] : memref<16x128xf32, #tpu.memory_space<vmem>>, vector<16x128xf32>
      %c0_12 = arith.constant 0 : index
      %c0_13 = arith.constant 0 : index
      %17 = vector.load %arg6[%c0_12, %c0_13] : memref<16x128xf32, #tpu.memory_space<vmem>>, vector<16x128xf32>
      tpu.vector_store %arg6[%c0_12, %c0_13], %16 {strides = array<i32>} : memref<16x128xf32, #tpu.memory_space<vmem>>, vector<16x128xf32>,
    } else {
    }
    %c0 = arith.constant 0 : index
    %c0_1 = arith.constant 0 : index
    %c0_2 = arith.constant 0 : index
    %3 = vector.load %arg3[%c0, %c0_1, %c0_2] : memref<1x128x128xf32, #tpu.memory_space<vmem>>, vector<1x128x128xf32>
    %4 = vector.shape_cast %3 : vector<1x128x128xf32> to vector<128x128xf32>
    %c0_3 = arith.constant 0 : index
    %c0_4 = arith.constant 0 : index
    %5 = vector.load %arg6[%c0_3, %c0_4] : memref<16x128xf32, #tpu.memory_space<vmem>>, vector<16x128xf32>
    %cst = arith.constant dense<0.000000e+00> : vector<16x128xf32>
    %6 = tpu.matmul %5, %4, %cst {dimension_numbers = #tpu.dot_dimension_numbers<[1], [0], [0], [1], [0, 0, 1, 1], [], []>} : vector<16x128xf32>, vector<128x128xf32>, vector<16x128xf32> -> vector<16x128xf32>
    %7 = arith.index_cast %arg1 : i32 to index
    %c0_5 = arith.constant 0 : index
    %c0_6 = arith.constant 0 : index
    %8 = vector.load %arg4[%7, %c0_5, %c0_6] : memref<3x1x128xf32, #tpu.memory_space<vmem>>, vector<1x1x128xf32>
    %9 = vector.shape_cast %8 : vector<1x1x128xf32> to vector<1x128xf32>
    %10 = vector.broadcast %9 : vector<1x128xf32> to vector<16x128xf32>
    %11 = arith.addf %6, %10 : vector<16x128xf32>
    %c0_7 = arith.constant 0 : index
    %c0_8 = arith.constant 0 : index
    %12 = vector.load %arg6[%c0_7, %c0_8] : memref<16x128xf32, #tpu.memory_space<vmem>>, vector<16x128xf32>
    tpu.vector_store %arg6[%c0_7, %c0_8], %11 {strides = array<i32>} : memref<16x128xf32, #tpu.memory_space<vmem>>, vector<16x128xf32>,
    %c2_i32 = arith.constant 2 : i32
    %13 = arith.cmpi eq, %arg1, %c2_i32 : i32
    %14 = arith.extui %13 : i1 to i32
    %c0_i32_9 = arith.constant 0 : i32
    %15 = arith.cmpi ne, %14, %c0_i32_9 : i32
    scf.if %15 {
      %c0_10 = arith.constant 0 : index
      %c0_11 = arith.constant 0 : index
      %16 = vector.load %arg6[%c0_10, %c0_11] : memref<16x128xf32, #tpu.memory_space<vmem>>, vector<16x128xf32>
      %c0_12 = arith.constant 0 : index
      %c0_13 = arith.constant 0 : index
      %17 = vector.load %arg2[%c0_12, %c0_13] : memref<16x128xf32, #tpu.memory_space<vmem>>, vector<16x128xf32>
      %18 = arith.addf %16, %17 : vector<16x128xf32>
      %c0_14 = arith.constant 0 : index
      %c0_15 = arith.constant 0 : index
      %19 = vector.load %arg5[%c0_14, %c0_15] : memref<16x128xf32, #tpu.memory_space<vmem>>, vector<16x128xf32>
      tpu.vector_store %arg5[%c0_14, %c0_15], %18 {strides = array<i32>} : memref<16x128xf32, #tpu.memory_space<vmem>>, vector<16x128xf32>,
    } else {
    }
    return
  }
  func.func @transform_0(%arg0: i32, %arg1: i32) -> (i32, i32) {
    %c0_i32 = arith.constant 0 : i32
    %c0_i32_0 = arith.constant 0 : i32
    return %arg0, %c0_i32 : i32, i32
  }
  func.func @transform_1(%arg0: i32, %arg1: i32) -> (i32, i32, i32) {
    %c0_i32 = arith.constant 0 : i32
    %c0_i32_0 = arith.constant 0 : i32
    %c0_i32_1 = arith.constant 0 : i32
    return %arg1, %c0_i32, %c0_i32_0 : i32, i32, i32
  }
  func.func @transform_2(%arg0: i32, %arg1: i32) -> (i32, i32, i32) {
    %c0_i32 = arith.constant 0 : i32
    %c0_i32_0 = arith.constant 0 : i32
    %c0_i32_1 = arith.constant 0 : i32
    %c0_i32_2 = arith.constant 0 : i32
    return %c0_i32, %c0_i32_0, %c0_i32_1 : i32, i32, i32
  }
  func.func @transform_3(%arg0: i32, %arg1: i32) -> (i32, i32) {
    %c0_i32 = arith.constant 0 : i32
    %c0_i32_0 = arith.constant 0 : i32
    return %arg0, %c0_i32 : i32, i32
  }
}

</mosaic_0001>

<llo_original>
// kernel: tpu_custom_call.1
$region0: #{tpu_custom_call.1}
  #allocation0 [shape = 'u32[]', space=smem, size = 0x4, offset = 0x4, fixed_abs, tag = 'smem constant byte address 0x4 - core index']
  #allocation1 [shape = 'u32[144,128]{1,0:T(1,128)}', space=vmem, size = 0x12000, scoped, tag = 'internal scratch']
  #allocation2 [shape = 'f32[16,128]{1,0:T(8,128)}', space=vmem, size = 0x2000, scoped, tag = 'scratch operand']
  %s0 = inlined_call_operand.hbm [shape: f32[16,128], index: 0, kind: input, shape index: {}]
  %s1 = inlined_call_operand.hbm [shape: f32[3,128,128], index: 1, kind: input, shape index: {}]
  %s2 = inlined_call_operand.vmem [shape: f32[3,1,128], index: 2, kind: input, shape index: {}]
  %s3 = inlined_call_operand.hbm [shape: f32[16,128], index: 3, kind: output, shape index: {}]
  %s4 = sld [smem:[#allocation0]]
  $region61: #{tpu_custom_call.1} parent=0
    _
  %s6 = ssub.s32 1, %s4
  %s7 = scalar_select 0, %s6, %s4
  $region1: #{tpu_custom_call.1} parent=0
    #allocation3 [shape = 'u8[8192]{0}', space=vmem, size = 0x2000, scoped, tag = 'input window, operand 0, single buffered']
    #allocation4 [shape = 's32[2]{0}', space=sflag, size = 0x8, scoped, tag = 'scoped memory for tpu_custom_call.1']
    #allocation5 [shape = 's32[2]{0}', space=sflag, size = 0x8, scoped, tag = 'scoped memory for tpu_custom_call.1']
    #allocation6 [shape = 'u8[131072]{0}', space=vmem, size = 0x20000, scoped, tag = 'input window, operand 1']
    #allocation7 [shape = 's32[2]{0}', space=sflag, size = 0x8, scoped, tag = 'scoped memory for tpu_custom_call.1']
    #allocation8 [shape = 'u8[8192]{0}', space=vmem, size = 0x2000, scoped, tag = 'output window, operand 0, single buffered']
    %8 = vsyncpa [#allocation4], 0
    %9 = vsyncpa [#allocation7], 0
    %s10 = scalar_lea.sflag [#allocation7], 1
    %11 = vsyncpa %s10, 0
    %12 = vsyncpa [#allocation5], 0
    loop: start=0, step=1, limit=5
    $region2: #{tpu_custom_call.1} parent=1 // loop_pre_header
      _
    $region3: #{tpu_custom_call.1} parent=1 // loop_header
      %s14 = sphi 0, %s18
      %p15 = scmp.ge.s32.totalorder %s14, 5
      %s21 = sphi 0, %s33
      %s22 = sphi 0, %s29
      %s23 = sphi 0, %s21
      %s24 = sphi 0, %s22
      %s25 = sphi 0, %s23
      %s26 = sphi 0, %s24
      %s36 = sphi 0, %s38
      %s39 = sphi 0, %s36
      %s40 = sphi 0, %s39
      %s56 = sphi 0, %s40
      %s62 = sphi 0, %s64
      %s65 = sphi 0, %s62
      %s66 = sphi 0, %s65
      %s82 = sphi 0, %s66
      %s86 = sphi 0, %s86
      %s88 = sphi 0, %s86
      %s89 = sphi 0, %s88
      %s103 = sphi 0, %s89
      %s109 = sphi 0, %s111
      %s112 = sphi 0, %s109
      %s113 = sphi 0, %s112
      %s129 = sphi 0, %s113
    $region4: #{tpu_custom_call.1} parent=1 // loop_header_branch
      %17 = sbr.rel (%p15) target = $region8
    $region5: #{tpu_custom_call.1} parent=1 // loop_body
      %s19 = ssub.s32 %s14, 1
      %s20 = ssub.s32 %s14, 2
      %s27 = sadd.s32 1, %s22
      %p28 = scmp.ge.s32.totalorder %s27, 3
      %s29 = scalar_select %p28, 0, %s27
      %s30 = sadd.s32 1, %s21
      %s31 = scalar_select %p28, %s30, %s21
      %p32 = scmp.ge.s32.totalorder %s31, 1
      %s33 = scalar_select %p32, 0, %s31
      %s34 = ssub.s32 %s21, %s33
      %p35 = scmp.eq.s32.totalorder %s34, 0
      %s37 = sadd.s32 %s36, 1
      %s38 = scalar_select %p35, %s36, %s37
      %p41 = pneg %p35
      %p42 = scmp.eq.s32.totalorder %s14, 2
      %p43 = por %p41, %p42
      %p44 = scmp.ne.s32.totalorder %s36, %s39
      %p45 = scmp.eq.s32.totalorder %s14, 0
      %p46 = por %p44, %p45
      %p47 = scmp.ne.s32.totalorder %s36, %s39
      %p48 = scmp.eq.s32.totalorder %s19, 2
      %p49 = por %p47, %p48
      %p50 = scmp.ne.s32.totalorder %s39, %s40
      %p51 = scmp.eq.s32.totalorder %s19, 0
      %p52 = por %p50, %p51
      %p53 = scmp.ne.s32.totalorder %s39, %s40
      %p54 = scmp.eq.s32.totalorder %s20, 2
      %p55 = por %p53, %p54
      %p57 = scmp.ne.s32.totalorder %s40, %s56
      %p58 = scmp.eq.s32.totalorder %s20, 0
      %p59 = por %p57, %p58
      %s60 = ssub.s32 %s22, %s29
      %p61 = scmp.eq.s32.totalorder %s60, 0
      %s63 = sadd.s32 %s62, 1
      %s64 = scalar_select %p61, %s62, %s63
      %p67 = pneg %p61
      %p68 = scmp.eq.s32.totalorder %s14, 2
      %p69 = por %p67, %p68
      %p70 = scmp.ne.s32.totalorder %s62, %s65
      %p71 = scmp.eq.s32.totalorder %s14, 0
      %p72 = por %p70, %p71
      %p73 = scmp.ne.s32.totalorder %s62, %s65
      %p74 = scmp.eq.s32.totalorder %s19, 2
      %p75 = por %p73, %p74
      %p76 = scmp.ne.s32.totalorder %s65, %s66
      %p77 = scmp.eq.s32.totalorder %s19, 0
      %p78 = por %p76, %p77
      %p79 = scmp.ne.s32.totalorder %s65, %s66
      %p80 = scmp.eq.s32.totalorder %s20, 2
      %p81 = por %p79, %p80
      %p83 = scmp.ne.s32.totalorder %s66, %s82
      %p84 = scmp.eq.s32.totalorder %s20, 0
      %p85 = por %p83, %p84
      %s87 = sadd.s32 %s86, 1
      %p90 = scmp.eq.s32.totalorder %s14, 2
      %p91 = scmp.ne.s32.totalorder %s86, %s88
      %p92 = scmp.eq.s32.totalorder %s14, 0
      %p93 = por %p91, %p92
      %p94 = scmp.ne.s32.totalorder %s86, %s88
      %p95 = scmp.eq.s32.totalorder %s19, 2
      %p96 = por %p94, %p95
      %p97 = scmp.ne.s32.totalorder %s88, %s89
      %p98 = scmp.eq.s32.totalorder %s19, 0
      %p99 = por %p97, %p98
      %p100 = scmp.ne.s32.totalorder %s88, %s89
      %p101 = scmp.eq.s32.totalorder %s20, 2
      %p102 = por %p100, %p101
      %p104 = scmp.ne.s32.totalorder %s89, %s103
      %p105 = scmp.eq.s32.totalorder %s20, 0
      %p106 = por %p104, %p105
      %s107 = ssub.s32 %s21, %s33
      %p108 = scmp.eq.s32.totalorder %s107, 0
      %s110 = sadd.s32 %s109, 1
      %s111 = scalar_select %p108, %s109, %s110
      %p114 = pneg %p108
      %p115 = scmp.eq.s32.totalorder %s14, 2
      %p116 = por %p114, %p115
      %p117 = scmp.ne.s32.totalorder %s109, %s112
      %p118 = scmp.eq.s32.totalorder %s14, 0
      %p119 = por %p117, %p118
      %p120 = scmp.ne.s32.totalorder %s109, %s112
      %p121 = scmp.eq.s32.totalorder %s19, 2
      %p122 = por %p120, %p121
      %p123 = scmp.ne.s32.totalorder %s112, %s113
      %p124 = scmp.eq.s32.totalorder %s19, 0
      %p125 = por %p123, %p124
      %p126 = scmp.ne.s32.totalorder %s112, %s113
      %p127 = scmp.eq.s32.totalorder %s20, 2
      %p128 = por %p126, %p127
      %p130 = scmp.ne.s32.totalorder %s113, %s129
      %p131 = scmp.eq.s32.totalorder %s20, 0
      %p132 = por %p130, %p131
      %p133 = scmp.le.s32.totalorder 1, %s14
      %p134 = scmp.lt.s32.totalorder %s14, 4
      %p135 = pnand %p133, %p134
      %p136 = pneg %p135
      // Predicated region
      $region9: #{tpu_custom_call.1} parent=5 // pred_check
        _
      $region10: #{tpu_custom_call.1} parent=5 // pred_check_branch
        %138 = sbr.rel (%p135) target = $region12
      $region11: #{tpu_custom_call.1} parent=5 // pred_region
        %s139 = ssub.s32 %s14, 1
        // Predicated region
        $region13: #{tpu_custom_call.1} parent=11 // pred_check
          %p140 = pneg %p52
        $region14: #{tpu_custom_call.1} parent=11 // pred_check_branch
          %142 = sbr.rel (%p140) target = $region16
        $region15: #{tpu_custom_call.1} parent=11 // pred_region
          %s143 = smul.u32 2, %s23
          %s145 = ssub.s32 256, 256
          %146 = vsyncadd [#allocation4], %s145
          %s147 = smul.addr %s143, 128
          %s148 = scalar_lea.hbm %s0, %s147
          %s149 = sshll.u32 [#allocation3], 4
          %s150 = int_to_ptr.vmem [resolvable:$true] %s149
          %155 = dma.hbm_to_vmem [thread:$0]  %s148, 256, %s150, [#allocation4], 128, 128, 8
        $region16: #{tpu_custom_call.1} parent=11 // pred_fallthru
          _
        // Predicated region
        $region17: #{tpu_custom_call.1} parent=11 // pred_check
          %p156 = pneg %p99
        $region18: #{tpu_custom_call.1} parent=11 // pred_check_branch
          %158 = sbr.rel (%p156) target = $region20
        $region19: #{tpu_custom_call.1} parent=11 // pred_region
          _
        $region20: #{tpu_custom_call.1} parent=11 // pred_fallthru
          _
      $region12: #{tpu_custom_call.1} parent=5 // pred_fallthru
        _
      %p159 = scmp.lt.s32.totalorder %s14, 3
      // Predicated region
      $region21: #{tpu_custom_call.1} parent=5 // pred_check
        %p160 = pneg %p159
      $region22: #{tpu_custom_call.1} parent=5 // pred_check_branch
        %162 = sbr.rel (%p160) target = $region24
      $region23: #{tpu_custom_call.1} parent=5 // pred_region
        // Predicated region
        $region25: #{tpu_custom_call.1} parent=23 // pred_check
          %p163 = pneg %p72
        $region26: #{tpu_custom_call.1} parent=23 // pred_check_branch
          %165 = sbr.rel (%p163) target = $region28
        $region27: #{tpu_custom_call.1} parent=23 // pred_region
          %s166 = sand.u32 %s62, 1
          %s167 = scalar_lea.sflag [#allocation7], %s166
          %s168 = sand.u32 %s62, 1
          %s169 = smul.addr %s168, 128
          %s170 = scalar_lea.vmem [#allocation6], %s169
          %s172 = ssub.s32 2048, 2048
          %173 = vsyncadd %s167, %s172
          %s174 = smul.addr %s22, 16
          %s175 = smul.addr %s174, 128
          %s176 = scalar_lea.hbm %s1, %s175
          %s177 = sshll.u32 %s170, 4
          %s178 = int_to_ptr.vmem [resolvable:$true] %s177
          %183 = dma.hbm_to_vmem [thread:$0]  %s176, 2048, %s178, %s167, 128, 128, 8
        $region28: #{tpu_custom_call.1} parent=23 // pred_fallthru
          _
      $region24: #{tpu_custom_call.1} parent=5 // pred_fallthru
        _
      %p184 = scmp.le.s32.totalorder 1, %s14
      %p185 = scmp.lt.s32.totalorder %s14, 4
      %p186 = pnand %p184, %p185
      %p187 = pneg %p186
      // Predicated region
      $region29: #{tpu_custom_call.1} parent=5 // pred_check
        _
      $region30: #{tpu_custom_call.1} parent=5 // pred_check_branch
        %189 = sbr.rel (%p186) target = $region32
      $region31: #{tpu_custom_call.1} parent=5 // pred_region
        %s190 = ssub.s32 %s14, 1
        // Predicated region
        $region33: #{tpu_custom_call.1} parent=31 // pred_check
          %p191 = pneg %p52
        $region34: #{tpu_custom_call.1} parent=31 // pred_check_branch
          %193 = sbr.rel (%p191) target = $region36
        $region35: #{tpu_custom_call.1} parent=31 // pred_region
          %194 = dma.done [#allocation4], 256
        $region36: #{tpu_custom_call.1} parent=31 // pred_fallthru
          _
        %s195 = sand.u32 %s65, 1
        %s196 = scalar_lea.sflag [#allocation7], %s195
        %s197 = sand.u32 %s65, 1
        %s198 = smul.addr %s197, 128
        %s199 = scalar_lea.vmem [#allocation6], %s198
        // Predicated region
        $region37: #{tpu_custom_call.1} parent=31 // pred_check
          %p200 = pneg %p78
        $region38: #{tpu_custom_call.1} parent=31 // pred_check_branch
          %202 = sbr.rel (%p200) target = $region40
        $region39: #{tpu_custom_call.1} parent=31 // pred_region
          %203 = dma.done %s196, 2048
        $region40: #{tpu_custom_call.1} parent=31 // pred_fallthru
          _
        %p204 = pneg %p52
        %p205 = pneg %p49
        %s206 = sand.u32 %s65, 1
        %s207 = scalar_lea.sflag [#allocation7], %s206
        %s208 = sand.u32 %s65, 1
        %s209 = smul.addr %s208, 128
        %s210 = scalar_lea.vmem [#allocation6], %s209
        %p211 = pneg %p78
        %p212 = pneg %p75
        %p213 = pneg %p99
        %p214 = pneg %p96
        %p215 = pneg %p125
        %p216 = pneg %p122
        %s217 = smul.u32 2, %s23
        %s218 = smul.u32 2, %s23
        %p219 = scmp.eq.s32.totalorder %s24, 0
        // Predicated region
        $region41: #{tpu_custom_call.1} parent=31 // pred_check
          %p220 = pneg %p219
        $region42: #{tpu_custom_call.1} parent=31 // pred_check_branch
          %222 = sbr.rel (%p220) target = $region44
        $region43: #{tpu_custom_call.1} parent=31 // pred_region
          %v223 = vld [vmem:[#allocation3] sm:$0xff]
          %v224 = vld [vmem:[#allocation3 + $0x8] sm:$0xff]
          %225 = vst [vmem:[#allocation2] sm:$0xff] %v223
          %226 = vst [vmem:[#allocation2 + $0x8] sm:$0xff] %v224
        $region44: #{tpu_custom_call.1} parent=31 // pred_fallthru
          _
        %v227 = vld [vmem:[%s199] sm:$0xff]
        %v228 = vld [vmem:[%s199 + $0x8] sm:$0xff]
        %v229 = vld [vmem:[%s199 + $0x10] sm:$0xff]
        %v230 = vld [vmem:[%s199 + $0x18] sm:$0xff]
        %v231 = vld [vmem:[%s199 + $0x20] sm:$0xff]
        %v232 = vld [vmem:[%s199 + $0x28] sm:$0xff]
        %v233 = vld [vmem:[%s199 + $0x30] sm:$0xff]
        %v234 = vld [vmem:[%s199 + $0x38] sm:$0xff]
        %v235 = vld [vmem:[%s199 + $0x40] sm:$0xff]
        %v236 = vld [vmem:[%s199 + $0x48] sm:$0xff]
        %v237 = vld [vmem:[%s199 + $0x50] sm:$0xff]
        %v238 = vld [vmem:[%s199 + $0x58] sm:$0xff]
        %v239 = vld [vmem:[%s199 + $0x60] sm:$0xff]
        %v240 = vld [vmem:[%s199 + $0x68] sm:$0xff]
        %v241 = vld [vmem:[%s199 + $0x70] sm:$0xff]
        %v242 = vld [vmem:[%s199 + $0x78] sm:$0xff]
        %v243 = vld [vmem:[#allocation2] sm:$0xff]
        %v244 = vld [vmem:[#allocation2 + $0x8] sm:$0xff]
        %s245 = scalar_lea.vmem %s2, %s24
        %v246 = vld [vmem:[%s245] sm:$0x1]
        %v248 = vlaneseq
        %v249 = vshrl.u32 %v248, 7
        %v250 = vsub.s32 0, %v249
        %v251 = vrot.slane %v246, %v250
        %253 = vmatprep.subr.mxu0 0.0
        %254 = vmatpush1.msra.mxu0 %v227
        %255 = vmatprep.subr.mxu0 0.0
        %256 = vmatpush1.msra.mxu0 %v228
        %257 = vmatprep.subr.mxu0 0.0
        %258 = vmatpush1.msra.mxu0 %v229
        %259 = vmatprep.subr.mxu0 0.0
        %260 = vmatpush1.msra.mxu0 %v230
        %261 = vmatprep.subr.mxu0 0.0
        %262 = vmatpush1.msra.mxu0 %v231
        %263 = vmatprep.subr.mxu0 0.0
        %264 = vmatpush1.msra.mxu0 %v232
        %265 = vmatprep.subr.mxu0 0.0
        %266 = vmatpush1.msra.mxu0 %v233
        %267 = vmatprep.subr.mxu0 0.0
        %268 = vmatpush1.msra.mxu0 %v234
        %269 = vmatprep.subr.mxu0 0.0
        %270 = vmatpush1.msra.mxu0 %v235
        %271 = vmatprep.subr.mxu0 0.0
        %272 = vmatpush1.msra.mxu0 %v236
        %273 = vmatprep.subr.mxu0 0.0
        %274 = vmatpush1.msra.mxu0 %v237
        %275 = vmatprep.subr.mxu0 0.0
        %276 = vmatpush1.msra.mxu0 %v238
        %277 = vmatprep.subr.mxu0 0.0
        %278 = vmatpush1.msra.mxu0 %v239
        %279 = vmatprep.subr.mxu0 0.0
        %280 = vmatpush1.msra.mxu0 %v240
        %281 = vmatprep.subr.mxu0 0.0
        %282 = vmatpush1.msra.mxu0 %v241
        %283 = vmatprep.subr.mxu0 0.0
        %284 = vmatpush1.msra.mxu0 %v242
        %285 = vmatprep.subr.mxu0 0.0
        %286 = vmatpush1.msra.mxu0 0.0
        %287 = vmatprep.subr.mxu0 0.0
        %288 = vmatpush1.msra.mxu0 0.0
        %289 = vmatprep.subr.mxu0 0.0
        %290 = vmatpush1.msra.mxu0 0.0
        %291 = vmatprep.subr.mxu0 0.0
        %292 = vmatpush1.msra.mxu0 0.0
        %293 = vmatprep.subr.mxu0 0.0
        %294 = vmatpush1.msra.mxu0 0.0
        %295 = vmatprep.subr.mxu0 0.0
        %296 = vmatpush1.msra.mxu0 0.0
        %297 = vmatprep.subr.mxu0 0.0
        %298 = vmatpush1.msra.mxu0 0.0
        %299 = vmatprep.subr.mxu0 0.0
        %300 = vmatpush1.msra.mxu0 0.0
        %301 = vmatprep.subr.mxu0 0.0
        %302 = vmatpush1.msra.mxu0 0.0
        %303 = vmatprep.subr.mxu0 0.0
        %304 = vmatpush1.msra.mxu0 0.0
        %305 = vmatprep.subr.mxu0 0.0
        %306 = vmatpush1.msra.mxu0 0.0
        %307 = vmatprep.subr.mxu0 0.0
        %308 = vmatpush1.msra.mxu0 0.0
        %309 = vmatprep.subr.mxu0 0.0
        %310 = vmatpush1.msra.mxu0 0.0
        %311 = vmatprep.subr.mxu0 0.0
        %312 = vmatpush1.msra.mxu0 0.0
        %313 = vmatprep.subr.mxu0 0.0
        %314 = vmatpush1.msra.mxu0 0.0
        %315 = vmatprep.subr.mxu0 0.0
        %316 = vmatpush1.msra.mxu0 0.0
        %317 = vmatprep.mubr.f32.mxu0 0.0
        %318 = vmatmul.mubr.f32.gmra.mrb[0].mxu0 %v243
        %v319 = vpop.f32.mrb[0].mxu0
        %v320 = vadd.f32 %v251, %v319
        %v321 = vpop.f32.mrb[0].mxu0
        %322 = vmatprep.mubr.f32.mxu0 0.0
        %323 = vmatmul.mubr.f32.gmra.mrb[0].mxu0 %v244
        %v324 = vpop.f32.mrb[0].mxu0
        %v325 = vadd.f32 %v251, %v324
        %v326 = vpop.f32.mrb[0].mxu0
        %327 = vdwg.mxu0
        %328 = vst [vmem:[#allocation2] sm:$0xff] %v320
        %329 = vst [vmem:[#allocation2 + $0x8] sm:$0xff] %v325
        %p330 = scmp.eq.s32.totalorder %s24, 2
        // Predicated region
        $region45: #{tpu_custom_call.1} parent=31 // pred_check
          %p331 = pneg %p330
        $region46: #{tpu_custom_call.1} parent=31 // pred_check_branch
          %333 = sbr.rel (%p331) target = $region48
        $region47: #{tpu_custom_call.1} parent=31 // pred_region
          %v334 = vld [vmem:[#allocation2] sm:$0xff]
          %v335 = vld [vmem:[#allocation2 + $0x8] sm:$0xff]
          %v336 = vld [vmem:[#allocation3] sm:$0xff]
          %v337 = vld [vmem:[#allocation3 + $0x8] sm:$0xff]
          %v338 = vadd.f32 %v334, %v336
          %v339 = vadd.f32 %v335, %v337
          %340 = vst [vmem:[#allocation8] sm:$0xff] %v338
          %341 = vst [vmem:[#allocation8 + $0x8] sm:$0xff] %v339
        $region48: #{tpu_custom_call.1} parent=31 // pred_fallthru
          _
        // Predicated region
        $region49: #{tpu_custom_call.1} parent=31 // pred_check
          %p342 = pneg %p122
        $region50: #{tpu_custom_call.1} parent=31 // pred_check_branch
          %344 = sbr.rel (%p342) target = $region52
        $region51: #{tpu_custom_call.1} parent=31 // pred_region
          %s345 = smul.u32 2, %s23
          %s347 = ssub.s32 256, 256
          %348 = vsyncadd [#allocation5], %s347
          %s349 = smul.addr %s345, 128
          %s350 = scalar_lea.hbm %s3, %s349
          %s351 = sshll.u32 [#allocation8], 4
          %s352 = int_to_ptr.vmem [resolvable:$true] %s351
          %357 = dma.vmem_to_hbm [thread:$0]  %s352, 256, %s350, [#allocation5], 128, 128, 8
        $region52: #{tpu_custom_call.1} parent=31 // pred_fallthru
          _
        // Predicated region
        $region53: #{tpu_custom_call.1} parent=31 // pred_check
          %p358 = pneg %p122
        $region54: #{tpu_custom_call.1} parent=31 // pred_check_branch
          %360 = sbr.rel (%p358) target = $region56
        $region55: #{tpu_custom_call.1} parent=31 // pred_region
          %361 = dma.done [#allocation5], 256
        $region56: #{tpu_custom_call.1} parent=31 // pred_fallthru
          _
      $region32: #{tpu_custom_call.1} parent=5 // pred_fallthru
        _
      %p362 = scmp.le.s32.totalorder 2, %s14
      // Predicated region
      $region57: #{tpu_custom_call.1} parent=5 // pred_check
        %p363 = pneg %p362
      $region58: #{tpu_custom_call.1} parent=5 // pred_check_branch
        %365 = sbr.rel (%p363) target = $region60
      $region59: #{tpu_custom_call.1} parent=5 // pred_region
        %s366 = ssub.s32 %s14, 2
      $region60: #{tpu_custom_call.1} parent=5 // pred_fallthru
        _
    $region6: #{tpu_custom_call.1} parent=1 // loop_footer
      %s18 = sadd.s32 1, %s14
    $region7: #{tpu_custom_call.1} parent=1 // loop_footer_branch
      %13 = sbr.rel target = $region3
    $region8: #{tpu_custom_call.1} parent=1 // loop_exit
      _
    %367 = vsyncpa [#allocation4], 1
    %s368 = scalar_lea.sflag [#allocation4], 1
    %369 = vsyncpa %s368, 1
    %370 = vsyncpa [#allocation7], 1
    %s371 = scalar_lea.sflag [#allocation7], 1
    %372 = vsyncpa %s371, 1
    %373 = vsyncpa [#allocation5], 1
    %s374 = scalar_lea.sflag [#allocation5], 1
    %375 = vsyncpa %s374, 1

</llo_original>
